<compile_context>
chip_gen: v6e
topology: v6e:2x2x1
jax: 0.10.0
libtpu: 0.0.40
codegen_flags: <defaults>
</compile_context>

<pallas_src>
import functools

import jax
import jax.numpy as jnp
from jax import lax
from jax.experimental import pallas as pl
from jax.experimental.pallas import tpu as pltpu


_B_TILE = 8          # batch rows per grid step (fills the 8 sublanes)


def _loss_kernel(ploc_ref, plabel_ref, gloc_ref, glabel_ref, db_ref,
                 out_ref, m_sc, l_sc, p_sc,
                 *, scale_wh, d_valid, c_chunk, nb_idx):
    c_step = pl.program_id(1)
    glabel = glabel_ref[...]                       # (B, D) i32

    # ---------------- online softmax over class chunks ----------------
    @pl.when(c_step == 0)
    def _():
        m_sc[...] = jnp.full_like(m_sc, -1e30)
        l_sc[...] = jnp.zeros_like(l_sc)
        p_sc[...] = jnp.zeros_like(p_sc)

    z = plabel_ref[...]                            # (CC, B, D) f32
    m_old = m_sc[...]
    m_new = jnp.maximum(m_old, jnp.max(z, axis=0))                     # (B, D)
    l_sc[...] = (l_sc[...] * jnp.exp(m_old - m_new) +
                 jnp.sum(jnp.exp(z - m_new[None]), axis=0))
    m_sc[...] = m_new
    cls_idx = c_step * c_chunk + lax.broadcasted_iota(jnp.int32, z.shape, 0)
    p_sc[...] = p_sc[...] + jnp.sum(
        jnp.where(cls_idx == glabel[None], z, 0.0), axis=0)            # picked

    # ------------- final class step: loc loss + hard negatives -------------
    @pl.when(c_step == pl.num_programs(1) - 1)
    def _():
        ploc = ploc_ref[...]                       # (4, B, D)
        gloc = gloc_ref[...]                       # (4, B, D)
        dbc = db_ref[...]                          # (6, 1, D)
        B, D = glabel.shape

        maskb = glabel > 0
        maskf = maskb.astype(jnp.float32)
        pos_num = jnp.sum(maskf, axis=1, keepdims=True)                # (B, 1)

        # _loc_vec (encode gt against default boxes) + SmoothL1
        gxy = gloc[0:2] * dbc[0:2] - dbc[2:4]                          # (2,B,D)
        gwh = scale_wh * jnp.log(gloc[2:4]) - dbc[4:6]                 # (2,B,D)

        def smooth_l1(x):
            ax = jnp.abs(x)
            return jnp.where(ax < 1.0, 0.5 * ax * ax, ax - 0.5)

        sl1_box = (jnp.sum(smooth_l1(ploc[0:2] - gxy), axis=0) +
                   jnp.sum(smooth_l1(ploc[2:4] - gwh), axis=0))        # (B, D)
        sl1 = jnp.sum(maskf * sl1_box, axis=1, keepdims=True)          # (B, 1)

        # per-anchor cross-entropy from the online accumulators
        con = (m_sc[...] + jnp.log(l_sc[...])) - p_sc[...]             # (B, D)
        con_neg = jnp.where(maskb, 0.0, con)                           # (B, D)

        # Hard negative mining: per-row top-k threshold selection.
        # con_neg >= 0, so its f32 bit pattern is order-preserving as int32.
        idx = lax.broadcasted_iota(jnp.int32, (B, D), 1)
        keys = pltpu.bitcast(jnp.maximum(con_neg, 0.0), jnp.int32)
        keys = jnp.where(idx < d_valid, keys, jnp.int32(-1))   # drop pad cols
        neg_num = jnp.minimum(3.0 * pos_num, jnp.float32(d_valid))     # (B, 1)

        # 1) bit binary search (MSB->LSB) for the neg_num-th largest key/row.
        def vbody(_, carry):
            thr, bit = carry
            cand = jnp.bitwise_or(thr, bit)
            cnt = jnp.sum((keys >= cand).astype(jnp.float32),
                          axis=1, keepdims=True)
            return (jnp.where(cnt >= neg_num, cand, thr),
                    jnp.right_shift(bit, 1))

        thr, _ = lax.fori_loop(
            0, 31, vbody,
            (jnp.zeros((B, 1), jnp.int32), jnp.int32(1 << 30)))

        gt = keys > thr
        eq = keys == thr
        count_gt = jnp.sum(gt.astype(jnp.float32), axis=1, keepdims=True)
        remaining = neg_num - count_gt           # tied keys still to take

        # 2) bit binary search for the largest index cutoff taking exactly
        #    `remaining` tied keys (smallest indices first) -- matches the
        #    reference's stable descending sort tie-breaking.
        def ibody(_, carry):
            jcut, bit = carry
            cand = jnp.bitwise_or(jcut, bit)
            cnt = jnp.sum((eq & (idx <= cand)).astype(jnp.float32),
                          axis=1, keepdims=True)
            return (jnp.where(cnt <= remaining, cand, jcut),
                    jnp.right_shift(bit, 1))

        jcut, _ = lax.fori_loop(
            0, nb_idx, ibody,
            (jnp.zeros((B, 1), jnp.int32), jnp.int32(1 << (nb_idx - 1))))

        negb = gt | (eq & (idx <= jcut) & (remaining > 0.0))
        closs = jnp.sum(con * (maskf + negb.astype(jnp.float32)),
                        axis=1, keepdims=True)                         # (B, 1)

        total = sl1 + closs
        num_mask = (pos_num > 0).astype(jnp.float32)
        pos_c = jnp.maximum(pos_num, 1e-6)
        out_ref[...] = total * num_mask * pl.reciprocal(pos_c, approx=False)


def ssd_loss_pallas(ploc, plabel, gloc, glabel, dboxes, scale_xy, scale_wh,
                    *, class_block=32):
    """ploc/gloc: (N,4,D), plabel: (N,C,D), glabel: (N,D), dboxes: (1,4,D)."""
    N, four, D = ploc.shape
    assert four == 4
    C = plabel.shape[1]
    B = _B_TILE

    # Batch tiling: 8 rows per tile; even tile count (when >1) so the
    # "parallel" batch axis splits across both TensorCores on v7x.
    n_tiles = pl.cdiv(N, B)
    if n_tiles > 1 and n_tiles % 2:
        n_tiles += 1
    N_pad = n_tiles * B
    n_pad = N_pad - N

    # Anchor padding to a lane multiple; class-axis blocking.
    D_pad = ((D + 127) // 128) * 128
    d_pad = D_pad - D
    c_chunk = min(class_block, C)
    C_pad = pl.cdiv(C, c_chunk) * c_chunk
    n_csteps = C_pad // c_chunk
    nb_idx = max(1, (D_pad - 1).bit_length())

    # Re-layout: coords/classes leading, batch next to the anchor (lane) axis
    # so every per-anchor quantity in the kernel is a lane-dense (8, D) tile.
    # TODO(synk): at production sizes this logits transpose is a full HBM round
    # trip of the largest tensor; ideally the producer emits (C, N, D) already.
    ploc_t = jnp.transpose(ploc, (1, 0, 2)).astype(jnp.float32)     # (4, N, D)
    gloc_t = jnp.transpose(gloc, (1, 0, 2)).astype(jnp.float32)     # (4, N, D)
    plab_t = jnp.transpose(plabel, (1, 0, 2)).astype(jnp.float32)   # (C, N, D)
    glab = glabel.astype(jnp.int32)                                 # (N, D)

    # Pad classes with a very negative logit (never the max, exp -> 0).
    if C_pad > C:
        plab_t = jnp.pad(plab_t, ((0, C_pad - C), (0, 0), (0, 0)),
                         constant_values=-1e30)
    if n_pad or d_pad:
        ploc_t = jnp.pad(ploc_t, ((0, 0), (0, n_pad), (0, d_pad)))
        plab_t = jnp.pad(plab_t, ((0, 0), (0, n_pad), (0, d_pad)))
        # pad gt boxes with 1.0 so log(wh) stays finite (masked out anyway)
        gloc_t = jnp.pad(gloc_t, ((0, 0), (0, n_pad), (0, d_pad)),
                         constant_values=1.0)
        glab = jnp.pad(glab, ((0, n_pad), (0, d_pad)))

    # Default-box constants hoisted out of the kernel (batch invariant).
    db_xy = dboxes[0, 0:2, :]
    db_wh = dboxes[0, 2:4, :]
    db_const = jnp.concatenate(
        [scale_xy / db_wh,                 # rows 0-1
         scale_xy * db_xy / db_wh,         # rows 2-3
         scale_wh * jnp.log(db_wh)],       # rows 4-5
        axis=0).astype(jnp.float32)
    if d_pad:
        db_const = jnp.pad(db_const, ((0, 0), (0, d_pad)))
    db_const = db_const[:, None, :]                                 # (6, 1, D)

    kernel = functools.partial(_loss_kernel, scale_wh=float(scale_wh),
                               d_valid=D, c_chunk=c_chunk, nb_idx=nb_idx)

    cost = pl.CostEstimate(
        flops=int(N_pad * D_pad * (8 * C_pad + 3 * (31 + nb_idx) + 60)),
        transcendentals=int(N_pad * D_pad * (C_pad + 4)),
        bytes_accessed=int(4 * N_pad * D_pad * (C_pad + 9) + 4 * 6 * D_pad))

    per_batch = pl.pallas_call(
        kernel,
        out_shape=jax.ShapeDtypeStruct((N_pad, 1), jnp.float32),
        grid=(n_tiles, n_csteps),
        in_specs=[
            pl.BlockSpec((4, B, D_pad), lambda t, c: (0, t, 0)),        # ploc
            pl.BlockSpec((c_chunk, B, D_pad), lambda t, c: (c, t, 0)),  # plabel
            pl.BlockSpec((4, B, D_pad), lambda t, c: (0, t, 0)),        # gloc
            pl.BlockSpec((B, D_pad), lambda t, c: (t, 0)),              # glabel
            pl.BlockSpec((6, 1, D_pad), lambda t, c: (0, 0, 0)),        # db const
        ],
        out_specs=pl.BlockSpec((B, 1), lambda t, c: (t, 0)),
        scratch_shapes=[pltpu.VMEM((B, D_pad), jnp.float32),   # running max
                        pltpu.VMEM((B, D_pad), jnp.float32),   # running sum-exp
                        pltpu.VMEM((B, D_pad), jnp.float32)],  # picked logit
        compiler_params=pltpu.CompilerParams(
            dimension_semantics=("parallel", "arbitrary"),
            vmem_limit_bytes=32 * 1024 * 1024),
        cost_estimate=cost,
    )(ploc_t, plab_t, gloc_t, glab, db_const)
    return jnp.mean(per_batch[:N, 0])


def ssd_loss_ref(ploc, plabel, gloc, glabel, dboxes, scale_xy, scale_wh):
    """Pure-JAX reference mirroring the PyTorch SSD multibox loss."""
    D = glabel.shape[1]
    mask = glabel > 0
    pos_num = jnp.sum(mask, axis=1)
    gxy = scale_xy * (gloc[:, :2, :] - dboxes[:, :2, :]) / dboxes[:, 2:, :]
    gwh = scale_wh * jnp.log(gloc[:, 2:, :] / dboxes[:, 2:, :])
    vec_gd = jnp.concatenate([gxy, gwh], axis=1)
    ad = jnp.abs(ploc - vec_gd)
    sl1 = jnp.where(ad < 1.0, 0.5 * ad * ad, ad - 0.5).sum(axis=1)     # (N, D)
    sl1 = (mask.astype(jnp.float32) * sl1).sum(axis=1)                 # (N,)
    m = jnp.max(plabel, axis=1)
    lse = m + jnp.log(jnp.sum(jnp.exp(plabel - m[:, None, :]), axis=1))
    picked = jnp.take_along_axis(plabel, glabel[:, None, :], axis=1)[:, 0, :]
    con = lse - picked                                                 # (N, D)
    con_neg = jnp.where(mask, 0.0, con)
    con_idx = jnp.argsort(-con_neg, axis=1)        # stable descending sort
    con_rank = jnp.argsort(con_idx, axis=1)
    neg_num = jnp.minimum(3 * pos_num, D)[:, None]
    neg_mask = con_rank < neg_num
    closs = (con * (mask.astype(jnp.float32) +
                    neg_mask.astype(jnp.float32))).sum(axis=1)
    total = sl1 + closs
    num_mask = (pos_num > 0).astype(jnp.float32)
    pos = jnp.maximum(pos_num.astype(jnp.float32), 1e-6)
    return jnp.mean(total * num_mask / pos)


if __name__ == "__main__":
    key = jax.random.PRNGKey(0)
    N, C, D = 10, 8, 300                # batch, num classes, num anchors
    scale_xy, scale_wh = 10.0, 5.0      # 1/0.1, 1/0.2 (SSD defaults)

    k = jax.random.split(key, 8)
    # default boxes (xywh), deterministic synthetic parameter
    db_xy = jax.random.uniform(k[0], (1, 2, D), minval=0.05, maxval=0.95)
    db_wh = jax.random.uniform(k[1], (1, 2, D), minval=0.1, maxval=1.0)
    dboxes = jnp.concatenate([db_xy, db_wh], axis=1).astype(jnp.float32)

    ploc = (0.1 * jax.random.normal(k[2], (N, 4, D))).astype(jnp.float32)
    plabel = jax.random.normal(k[3], (N, C, D)).astype(jnp.float32)
    g_xy = jax.random.uniform(k[4], (N, 2, D), minval=0.05, maxval=0.95)
    g_wh = jax.random.uniform(k[5], (N, 2, D), minval=0.1, maxval=2.0)
    gloc = jnp.concatenate([g_xy, g_wh], axis=1).astype(jnp.float32)
    u = jax.random.uniform(k[6], (N, D))
    cls = jax.random.randint(k[7], (N, D), 1, C)
    glabel = jnp.where(u < 0.15, cls, 0).astype(jnp.int32)   # ~15% positives

    # class_block=3 forces 3 class chunks (with class padding) so the online
    # softmax path is exercised; D=300 exercises the anchor-padding path.
    out = ssd_loss_pallas(ploc, plabel, gloc, glabel, dboxes,
                          scale_xy, scale_wh, class_block=3)
    out = jax.block_until_ready(out)

    ref = ssd_loss_ref(ploc, plabel, gloc, glabel, dboxes, scale_xy, scale_wh)
    ref = jax.block_until_ready(ref)

    assert jnp.isfinite(out), "non-finite kernel output"
    assert jnp.allclose(out, ref, rtol=1e-4, atol=1e-4), (out, ref)
    print("KERNEL_OK")
</pallas_src>

<mosaic_0001>
module attributes {stable_mosaic.version = 11 : i64} {
  func.func @_loss_kernel(%arg0: i32, %arg1: i32, %arg2: memref<4x8x384xf32, #tpu.memory_space<vmem>>, %arg3: memref<3x8x384xf32, #tpu.memory_space<vmem>>, %arg4: memref<4x8x384xf32, #tpu.memory_space<vmem>>, %arg5: memref<8x384xi32, #tpu.memory_space<vmem>>, %arg6: memref<6x1x384xf32, #tpu.memory_space<vmem>>, %arg7: memref<8x1xf32, #tpu.memory_space<vmem>>, %arg8: memref<8x384xf32, #tpu.memory_space<vmem>>, %arg9: memref<8x384xf32, #tpu.memory_space<vmem>>, %arg10: memref<8x384xf32, #tpu.memory_space<vmem>>) attributes {dimension_semantics = [#tpu.dimension_semantics<parallel>, #tpu.dimension_semantics<arbitrary>], iteration_bounds = array<i64: 2, 3>, scalar_prefetch = 0 : i64, scratch_operands = 3 : i64, tpu.core_type = #tpu.core_type<tc>, window_params = [{transform_indices = @transform_0, window_bounds = array<i64: 4, 8, 384>}, {transform_indices = @transform_1, window_bounds = array<i64: 3, 8, 384>}, {transform_indices = @transform_2, window_bounds = array<i64: 4, 8, 384>}, {transform_indices = @transform_3, window_bounds = array<i64: 8, 384>}, {pipeline_mode = #tpu.pipeline_mode<synchronous>, transform_indices = @transform_4, window_bounds = array<i64: 6, 1, 384>}, {transform_indices = @transform_5, window_bounds = array<i64: 8, 1>}]} {
    %c0 = arith.constant 0 : index
    %c0_0 = arith.constant 0 : index
    %0 = vector.load %arg5[%c0, %c0_0] : memref<8x384xi32, #tpu.memory_space<vmem>>, vector<8x384xi32>
    %c0_i32 = arith.constant 0 : i32
    %1 = arith.cmpi eq, %arg1, %c0_i32 : i32
    %2 = arith.extui %1 : i1 to i32
    %c0_i32_1 = arith.constant 0 : i32
    %3 = arith.cmpi ne, %2, %c0_i32_1 : i32
    scf.if %3 {
      %cst_21 = arith.constant -1.000000e+30 : f32
      %36 = vector.broadcast %cst_21 : f32 to vector<8x384xf32>
      %c0_22 = arith.constant 0 : index
      %c0_23 = arith.constant 0 : index
      %37 = vector.load %arg8[%c0_22, %c0_23] : memref<8x384xf32, #tpu.memory_space<vmem>>, vector<8x384xf32>
      tpu.vector_store %arg8[%c0_22, %c0_23], %36 {strides = array<i32>} : memref<8x384xf32, #tpu.memory_space<vmem>>, vector<8x384xf32>,
      %cst_24 = arith.constant 0.000000e+00 : f32
      %38 = vector.broadcast %cst_24 : f32 to vector<8x384xf32>
      %c0_25 = arith.constant 0 : index
      %c0_26 = arith.constant 0 : index
      %39 = vector.load %arg9[%c0_25, %c0_26] : memref<8x384xf32, #tpu.memory_space<vmem>>, vector<8x384xf32>
      tpu.vector_store %arg9[%c0_25, %c0_26], %38 {strides = array<i32>} : memref<8x384xf32, #tpu.memory_space<vmem>>, vector<8x384xf32>,
      %cst_27 = arith.constant 0.000000e+00 : f32
      %40 = vector.broadcast %cst_27 : f32 to vector<8x384xf32>
      %c0_28 = arith.constant 0 : index
      %c0_29 = arith.constant 0 : index
      %41 = vector.load %arg10[%c0_28, %c0_29] : memref<8x384xf32, #tpu.memory_space<vmem>>, vector<8x384xf32>
      tpu.vector_store %arg10[%c0_28, %c0_29], %40 {strides = array<i32>} : memref<8x384xf32, #tpu.memory_space<vmem>>, vector<8x384xf32>,
    } else {
    }
    %c0_2 = arith.constant 0 : index
    %c0_3 = arith.constant 0 : index
    %c0_4 = arith.constant 0 : index
    %4 = vector.load %arg3[%c0_2, %c0_3, %c0_4] : memref<3x8x384xf32, #tpu.memory_space<vmem>>, vector<3x8x384xf32>
    %c0_5 = arith.constant 0 : index
    %c0_6 = arith.constant 0 : index
    %5 = vector.load %arg8[%c0_5, %c0_6] : memref<8x384xf32, #tpu.memory_space<vmem>>, vector<8x384xf32>
    %cst = arith.constant dense<0xFF800000> : vector<8x384xf32>
    %6 = vector.multi_reduction <maximumf>, %4, %cst [0] : vector<3x8x384xf32> to vector<8x384xf32>
    %7 = arith.maximumf %5, %6 : vector<8x384xf32>
    %c0_7 = arith.constant 0 : index
    %c0_8 = arith.constant 0 : index
    %8 = vector.load %arg9[%c0_7, %c0_8] : memref<8x384xf32, #tpu.memory_space<vmem>>, vector<8x384xf32>
    %9 = arith.subf %5, %7 : vector<8x384xf32>
    %10 = math.exp %9 : vector<8x384xf32>
    %11 = arith.mulf %8, %10 : vector<8x384xf32>
    %12 = vector.shape_cast %7 : vector<8x384xf32> to vector<1x8x384xf32>
    %13 = vector.broadcast %12 : vector<1x8x384xf32> to vector<3x8x384xf32>
    %14 = arith.subf %4, %13 : vector<3x8x384xf32>
    %15 = math.exp %14 : vector<3x8x384xf32>
    %cst_9 = arith.constant dense<0.000000e+00> : vector<8x384xf32>
    %16 = vector.multi_reduction <add>, %15, %cst_9 [0] : vector<3x8x384xf32> to vector<8x384xf32>
    %17 = arith.addf %11, %16 : vector<8x384xf32>
    %c0_10 = arith.constant 0 : index
    %c0_11 = arith.constant 0 : index
    %18 = vector.load %arg9[%c0_10, %c0_11] : memref<8x384xf32, #tpu.memory_space<vmem>>, vector<8x384xf32>
    tpu.vector_store %arg9[%c0_10, %c0_11], %17 {strides = array<i32>} : memref<8x384xf32, #tpu.memory_space<vmem>>, vector<8x384xf32>,
    %c0_12 = arith.constant 0 : index
    %c0_13 = arith.constant 0 : index
    %19 = vector.load %arg8[%c0_12, %c0_13] : memref<8x384xf32, #tpu.memory_space<vmem>>, vector<8x384xf32>
    tpu.vector_store %arg8[%c0_12, %c0_13], %7 {strides = array<i32>} : memref<8x384xf32, #tpu.memory_space<vmem>>, vector<8x384xf32>,
    %c3_i32 = arith.constant 3 : i32
    %20 = arith.muli %arg1, %c3_i32 : i32
    %21 = tpu.iota {dimensions = array<i32: 0>} : vector<3x8x384xi32>
    %22 = vector.broadcast %20 : i32 to vector<3x8x384xi32>
    %23 = arith.addi %22, %21 : vector<3x8x384xi32>
    %c0_14 = arith.constant 0 : index
    %c0_15 = arith.constant 0 : index
    %24 = vector.load %arg10[%c0_14, %c0_15] : memref<8x384xf32, #tpu.memory_space<vmem>>, vector<8x384xf32>
    %25 = vector.shape_cast %0 : vector<8x384xi32> to vector<1x8x384xi32>
    %26 = vector.broadcast %25 : vector<1x8x384xi32> to vector<3x8x384xi32>
    %27 = arith.cmpi eq, %23, %26 : vector<3x8x384xi32>
    %cst_16 = arith.constant 0.000000e+00 : f32
    %28 = vector.broadcast %cst_16 : f32 to vector<3x8x384xf32>
    %29 = arith.select %27, %4, %28 : vector<3x8x384xi1>, vector<3x8x384xf32>
    %cst_17 = arith.constant dense<0.000000e+00> : vector<8x384xf32>
    %30 = vector.multi_reduction <add>, %29, %cst_17 [0] : vector<3x8x384xf32> to vector<8x384xf32>
    %31 = arith.addf %24, %30 : vector<8x384xf32>
    %c0_18 = arith.constant 0 : index
    %c0_19 = arith.constant 0 : index
    %32 = vector.load %arg10[%c0_18, %c0_19] : memref<8x384xf32, #tpu.memory_space<vmem>>, vector<8x384xf32>
    tpu.vector_store %arg10[%c0_18, %c0_19], %31 {strides = array<i32>} : memref<8x384xf32, #tpu.memory_space<vmem>>, vector<8x384xf32>,
    %c2_i32 = arith.constant 2 : i32
    %33 = arith.cmpi eq, %arg1, %c2_i32 : i32
    %34 = arith.extui %33 : i1 to i32
    %c0_i32_20 = arith.constant 0 : i32
    %35 = arith.cmpi ne, %34, %c0_i32_20 : i32
    scf.if %35 {
      %c0_21 = arith.constant 0 : index
      %c0_22 = arith.constant 0 : index
      %c0_23 = arith.constant 0 : index
      %36 = vector.load %arg2[%c0_21, %c0_22, %c0_23] : memref<4x8x384xf32, #tpu.memory_space<vmem>>, vector<4x8x384xf32>
      %c0_24 = arith.constant 0 : index
      %c0_25 = arith.constant 0 : index
      %c0_26 = arith.constant 0 : index
      %37 = vector.load %arg4[%c0_24, %c0_25, %c0_26] : memref<4x8x384xf32, #tpu.memory_space<vmem>>, vector<4x8x384xf32>
      %c0_27 = arith.constant 0 : index
      %c0_28 = arith.constant 0 : index
      %c0_29 = arith.constant 0 : index
      %38 = vector.load %arg6[%c0_27, %c0_28, %c0_29] : memref<6x1x384xf32, #tpu.memory_space<vmem>>, vector<6x1x384xf32>
      %c0_i32_30 = arith.constant 0 : i32
      %39 = vector.broadcast %c0_i32_30 : i32 to vector<8x384xi32>
      %40 = arith.cmpi sgt, %0, %39 : vector<8x384xi32>
      %41 = arith.extui %40 : vector<8x384xi1> to vector<8x384xi32>
      %42 = arith.sitofp %41 : vector<8x384xi32> to vector<8x384xf32>
      %cst_31 = arith.constant dense<0.000000e+00> : vector<8xf32>
      %43 = vector.multi_reduction <add>, %42, %cst_31 [1] : vector<8x384xf32> to vector<8xf32>
      %44 = vector.shape_cast %43 : vector<8xf32> to vector<8x1xf32>
      %45 = vector.extract_strided_slice %37 {offsets = [0, 0, 0], sizes = [2, 8, 384], strides = [1, 1, 1]} : vector<4x8x384xf32> to vector<2x8x384xf32>
      %46 = vector.extract_strided_slice %38 {offsets = [0, 0, 0], sizes = [2, 1, 384], strides = [1, 1, 1]} : vector<6x1x384xf32> to vector<2x1x384xf32>
      %47 = vector.broadcast %46 : vector<2x1x384xf32> to vector<2x8x384xf32>
      %48 = arith.mulf %45, %47 : vector<2x8x384xf32>
      %49 = vector.extract_strided_slice %38 {offsets = [2, 0, 0], sizes = [2, 1, 384], strides = [1, 1, 1]} : vector<6x1x384xf32> to vector<2x1x384xf32>
      %50 = vector.broadcast %49 : vector<2x1x384xf32> to vector<2x8x384xf32>
      %51 = arith.subf %48, %50 : vector<2x8x384xf32>
      %52 = vector.extract_strided_slice %37 {offsets = [2, 0, 0], sizes = [2, 8, 384], strides = [1, 1, 1]} : vector<4x8x384xf32> to vector<2x8x384xf32>
      %53 = math.log %52 : vector<2x8x384xf32>
      %cst_32 = arith.constant 5.000000e+00 : f32
      %54 = vector.broadcast %cst_32 : f32 to vector<2x8x384xf32>
      %55 = arith.mulf %54, %53 : vector<2x8x384xf32>
      %56 = vector.extract_strided_slice %38 {offsets = [4, 0, 0], sizes = [2, 1, 384], strides = [1, 1, 1]} : vector<6x1x384xf32> to vector<2x1x384xf32>
      %57 = vector.broadcast %56 : vector<2x1x384xf32> to vector<2x8x384xf32>
      %58 = arith.subf %55, %57 : vector<2x8x384xf32>
      %59 = vector.extract_strided_slice %36 {offsets = [0, 0, 0], sizes = [2, 8, 384], strides = [1, 1, 1]} : vector<4x8x384xf32> to vector<2x8x384xf32>
      %60 = arith.subf %59, %51 : vector<2x8x384xf32>
      %61 = math.absf %60 : vector<2x8x384xf32>
      %cst_33 = arith.constant 1.000000e+00 : f32
      %62 = vector.broadcast %cst_33 : f32 to vector<2x8x384xf32>
      %63 = arith.cmpf olt, %61, %62 : vector<2x8x384xf32>
      %cst_34 = arith.constant 5.000000e-01 : f32
      %64 = vector.broadcast %cst_34 : f32 to vector<2x8x384xf32>
      %65 = arith.mulf %64, %61 : vector<2x8x384xf32>
      %66 = arith.mulf %65, %61 : vector<2x8x384xf32>
      %cst_35 = arith.constant 5.000000e-01 : f32
      %67 = vector.broadcast %cst_35 : f32 to vector<2x8x384xf32>
      %68 = arith.subf %61, %67 : vector<2x8x384xf32>
      %69 = arith.select %63, %66, %68 : vector<2x8x384xi1>, vector<2x8x384xf32>
      %cst_36 = arith.constant dense<0.000000e+00> : vector<8x384xf32>
      %70 = vector.multi_reduction <add>, %69, %cst_36 [0] : vector<2x8x384xf32> to vector<8x384xf32>
      %71 = vector.extract_strided_slice %36 {offsets = [2, 0, 0], sizes = [2, 8, 384], strides = [1, 1, 1]} : vector<4x8x384xf32> to vector<2x8x384xf32>
      %72 = arith.subf %71, %58 : vector<2x8x384xf32>
      %73 = math.absf %72 : vector<2x8x384xf32>
      %cst_37 = arith.constant 1.000000e+00 : f32
      %74 = vector.broadcast %cst_37 : f32 to vector<2x8x384xf32>
      %75 = arith.cmpf olt, %73, %74 : vector<2x8x384xf32>
      %cst_38 = arith.constant 5.000000e-01 : f32
      %76 = vector.broadcast %cst_38 : f32 to vector<2x8x384xf32>
      %77 = arith.mulf %76, %73 : vector<2x8x384xf32>
      %78 = arith.mulf %77, %73 : vector<2x8x384xf32>
      %cst_39 = arith.constant 5.000000e-01 : f32
      %79 = vector.broadcast %cst_39 : f32 to vector<2x8x384xf32>
      %80 = arith.subf %73, %79 : vector<2x8x384xf32>
      %81 = arith.select %75, %78, %80 : vector<2x8x384xi1>, vector<2x8x384xf32>
      %cst_40 = arith.constant dense<0.000000e+00> : vector<8x384xf32>
      %82 = vector.multi_reduction <add>, %81, %cst_40 [0] : vector<2x8x384xf32> to vector<8x384xf32>
      %83 = arith.addf %70, %82 : vector<8x384xf32>
      %84 = arith.mulf %42, %83 : vector<8x384xf32>
      %cst_41 = arith.constant dense<0.000000e+00> : vector<8xf32>
      %85 = vector.multi_reduction <add>, %84, %cst_41 [1] : vector<8x384xf32> to vector<8xf32>
      %86 = vector.shape_cast %85 : vector<8xf32> to vector<8x1xf32>
      %c0_42 = arith.constant 0 : index
      %c0_43 = arith.constant 0 : index
      %87 = vector.load %arg8[%c0_42, %c0_43] : memref<8x384xf32, #tpu.memory_space<vmem>>, vector<8x384xf32>
      %c0_44 = arith.constant 0 : index
      %c0_45 = arith.constant 0 : index
      %88 = vector.load %arg9[%c0_44, %c0_45] : memref<8x384xf32, #tpu.memory_space<vmem>>, vector<8x384xf32>
      %89 = math.log %88 : vector<8x384xf32>
      %90 = arith.addf %87, %89 : vector<8x384xf32>
      %c0_46 = arith.constant 0 : index
      %c0_47 = arith.constant 0 : index
      %91 = vector.load %arg10[%c0_46, %c0_47] : memref<8x384xf32, #tpu.memory_space<vmem>>, vector<8x384xf32>
      %92 = arith.subf %90, %91 : vector<8x384xf32>
      %cst_48 = arith.constant 0.000000e+00 : f32
      %93 = vector.broadcast %cst_48 : f32 to vector<8x384xf32>
      %94 = arith.select %40, %93, %92 : vector<8x384xi1>, vector<8x384xf32>
      %95 = tpu.iota {dimensions = array<i32: 1>} : vector<8x384xi32>
      %cst_49 = arith.constant 0.000000e+00 : f32
      %96 = vector.broadcast %cst_49 : f32 to vector<8x384xf32>
      %97 = arith.maximumf %94, %96 : vector<8x384xf32>
      %98 = tpu.bitcast %97 : vector<8x384xf32> -> vector<8x384xi32>
      %c300_i32 = arith.constant 300 : i32
      %99 = vector.broadcast %c300_i32 : i32 to vector<8x384xi32>
      %100 = arith.cmpi slt, %95, %99 : vector<8x384xi32>
      %c-1_i32 = arith.constant -1 : i32
      %101 = vector.broadcast %c-1_i32 : i32 to vector<8x384xi32>
      %102 = arith.select %100, %98, %101 : vector<8x384xi1>, vector<8x384xi32>
      %cst_50 = arith.constant 3.000000e+00 : f32
      %103 = vector.broadcast %cst_50 : f32 to vector<8x1xf32>
      %104 = arith.mulf %103, %44 : vector<8x1xf32>
      %cst_51 = arith.constant 3.000000e+02 : f32
      %105 = vector.broadcast %cst_51 : f32 to vector<8x1xf32>
      %106 = arith.minimumf %104, %105 : vector<8x1xf32>
      %c0_i32_52 = arith.constant 0 : i32
      %107 = vector.broadcast %c0_i32_52 : i32 to vector<8x1xi32>
      %c1073741824_i32 = arith.constant 1073741824 : i32
      %c0_i32_53 = arith.constant 0 : i32
      %c31_i32 = arith.constant 31 : i32
      %108 = arith.addi %c0_i32_53, %c31_i32 : i32
      %c1_i32 = arith.constant 1 : i32
      %109:2 = scf.for %arg11 = %c0_i32_53 to %108 step %c1_i32 iter_args(%arg12 = %107, %arg13 = %c1073741824_i32) -> (vector<8x1xi32>, i32)  : i32 {
        %147 = vector.broadcast %arg13 : i32 to vector<8x1xi32>
        %148 = arith.ori %arg12, %147 : vector<8x1xi32>
        %149 = vector.broadcast %148 : vector<8x1xi32> to vector<8x384xi32>
        %150 = arith.cmpi sge, %102, %149 : vector<8x384xi32>
        %151 = arith.extui %150 : vector<8x384xi1> to vector<8x384xi32>
        %152 = arith.sitofp %151 : vector<8x384xi32> to vector<8x384xf32>
        %cst_64 = arith.constant dense<0.000000e+00> : vector<8xf32>
        %153 = vector.multi_reduction <add>, %152, %cst_64 [1] : vector<8x384xf32> to vector<8xf32>
        %154 = vector.shape_cast %153 : vector<8xf32> to vector<8x1xf32>
        %155 = arith.cmpf oge, %154, %106 : vector<8x1xf32>
        %156 = arith.select %155, %148, %arg12 : vector<8x1xi1>, vector<8x1xi32>
        %c1_i32_65 = arith.constant 1 : i32
        %157 = arith.shrsi %arg13, %c1_i32_65 : i32
        scf.yield %156, %157 : vector<8x1xi32>, i32
      }
      %110 = vector.broadcast %109#0 : vector<8x1xi32> to vector<8x384xi32>
      %111 = arith.cmpi sgt, %102, %110 : vector<8x384xi32>
      %112 = vector.broadcast %109#0 : vector<8x1xi32> to vector<8x384xi32>
      %113 = arith.cmpi eq, %102, %112 : vector<8x384xi32>
      %114 = arith.extui %111 : vector<8x384xi1> to vector<8x384xi32>
      %115 = arith.sitofp %114 : vector<8x384xi32> to vector<8x384xf32>
      %cst_54 = arith.constant dense<0.000000e+00> : vector<8xf32>
      %116 = vector.multi_reduction <add>, %115, %cst_54 [1] : vector<8x384xf32> to vector<8xf32>
      %117 = vector.shape_cast %116 : vector<8xf32> to vector<8x1xf32>
      %118 = arith.subf %106, %117 : vector<8x1xf32>
      %c0_i32_55 = arith.constant 0 : i32
      %119 = vector.broadcast %c0_i32_55 : i32 to vector<8x1xi32>
      %c256_i32 = arith.constant 256 : i32
      %c0_i32_56 = arith.constant 0 : i32
      %c9_i32 = arith.constant 9 : i32
      %120 = arith.addi %c0_i32_56, %c9_i32 : i32
      %c1_i32_57 = arith.constant 1 : i32
      %121:2 = scf.for %arg11 = %c0_i32_56 to %120 step %c1_i32_57 iter_args(%arg12 = %119, %arg13 = %c256_i32) -> (vector<8x1xi32>, i32)  : i32 {
        %147 = vector.broadcast %arg13 : i32 to vector<8x1xi32>
        %148 = arith.ori %arg12, %147 : vector<8x1xi32>
        %149 = vector.broadcast %148 : vector<8x1xi32> to vector<8x384xi32>
        %150 = arith.cmpi sle, %95, %149 : vector<8x384xi32>
        %151 = arith.andi %113, %150 : vector<8x384xi1>
        %152 = arith.extui %151 : vector<8x384xi1> to vector<8x384xi32>
        %153 = arith.sitofp %152 : vector<8x384xi32> to vector<8x384xf32>
        %cst_64 = arith.constant dense<0.000000e+00> : vector<8xf32>
        %154 = vector.multi_reduction <add>, %153, %cst_64 [1] : vector<8x384xf32> to vector<8xf32>
        %155 = vector.shape_cast %154 : vector<8xf32> to vector<8x1xf32>
        %156 = arith.cmpf ole, %155, %118 : vector<8x1xf32>
        %157 = arith.select %156, %148, %arg12 : vector<8x1xi1>, vector<8x1xi32>
        %c1_i32_65 = arith.constant 1 : i32
        %158 = arith.shrsi %arg13, %c1_i32_65 : i32
        scf.yield %157, %158 : vector<8x1xi32>, i32
      }
      %122 = vector.broadcast %121#0 : vector<8x1xi32> to vector<8x384xi32>
      %123 = arith.cmpi sle, %95, %122 : vector<8x384xi32>
      %124 = arith.andi %113, %123 : vector<8x384xi1>
      %cst_58 = arith.constant 0.000000e+00 : f32
      %125 = vector.broadcast %cst_58 : f32 to vector<8x1xf32>
      %126 = arith.cmpf ogt, %118, %125 : vector<8x1xf32>
      %127 = vector.broadcast %126 : vector<8x1xi1> to vector<8x384xi1>
      %128 = arith.andi %124, %127 : vector<8x384xi1>
      %129 = arith.ori %111, %128 : vector<8x384xi1>
      %130 = arith.extui %129 : vector<8x384xi1> to vector<8x384xi32>
      %131 = arith.sitofp %130 : vector<8x384xi32> to vector<8x384xf32>
      %132 = arith.addf %42, %131 : vector<8x384xf32>
      %133 = arith.mulf %92, %132 : vector<8x384xf32>
      %cst_59 = arith.constant dense<0.000000e+00> : vector<8xf32>
      %134 = vector.multi_reduction <add>, %133, %cst_59 [1] : vector<8x384xf32> to vector<8xf32>
      %135 = vector.shape_cast %134 : vector<8xf32> to vector<8x1xf32>
      %136 = arith.addf %86, %135 : vector<8x1xf32>
      %cst_60 = arith.constant 0.000000e+00 : f32
      %137 = vector.broadcast %cst_60 : f32 to vector<8x1xf32>
      %138 = arith.cmpf ogt, %44, %137 : vector<8x1xf32>
      %139 = arith.extui %138 : vector<8x1xi1> to vector<8x1xi32>
      %140 = arith.sitofp %139 : vector<8x1xi32> to vector<8x1xf32>
      %cst_61 = arith.constant 9.99999997E-7 : f32
      %141 = vector.broadcast %cst_61 : f32 to vector<8x1xf32>
      %142 = arith.maximumf %44, %141 : vector<8x1xf32>
      %143 = arith.mulf %136, %140 : vector<8x1xf32>
      %144 = tpu.reciprocal %142 : vector<8x1xf32> -> vector<8x1xf32>
      %145 = arith.mulf %143, %144 : vector<8x1xf32>
      %c0_62 = arith.constant 0 : index
      %c0_63 = arith.constant 0 : index
      %146 = vector.load %arg7[%c0_62, %c0_63] : memref<8x1xf32, #tpu.memory_space<vmem>>, vector<8x1xf32>
      tpu.vector_store %arg7[%c0_62, %c0_63], %145 {strides = array<i32>} : memref<8x1xf32, #tpu.memory_space<vmem>>, vector<8x1xf32>,
    } else {
    }
    return
  }
  func.func @transform_0(%arg0: i32, %arg1: i32) -> (i32, i32, i32) {
    %c0_i32 = arith.constant 0 : i32
    %c0_i32_0 = arith.constant 0 : i32
    %c0_i32_1 = arith.constant 0 : i32
    return %c0_i32, %arg0, %c0_i32_0 : i32, i32, i32
  }
  func.func @transform_1(%arg0: i32, %arg1: i32) -> (i32, i32, i32) {
    %c0_i32 = arith.constant 0 : i32
    %c0_i32_0 = arith.constant 0 : i32
    return %arg1, %arg0, %c0_i32 : i32, i32, i32
  }
  func.func @transform_2(%arg0: i32, %arg1: i32) -> (i32, i32, i32) {
    %c0_i32 = arith.constant 0 : i32
    %c0_i32_0 = arith.constant 0 : i32
    %c0_i32_1 = arith.constant 0 : i32
    return %c0_i32, %arg0, %c0_i32_0 : i32, i32, i32
  }
  func.func @transform_3(%arg0: i32, %arg1: i32) -> (i32, i32) {
    %c0_i32 = arith.constant 0 : i32
    %c0_i32_0 = arith.constant 0 : i32
    return %arg0, %c0_i32 : i32, i32
  }
  func.func @transform_4(%arg0: i32, %arg1: i32) -> (i32, i32, i32) {
    %c0_i32 = arith.constant 0 : i32
    %c0_i32_0 = arith.constant 0 : i32
    %c0_i32_1 = arith.constant 0 : i32
    %c0_i32_2 = arith.constant 0 : i32
    return %c0_i32, %c0_i32_0, %c0_i32_1 : i32, i32, i32
  }
  func.func @transform_5(%arg0: i32, %arg1: i32) -> (i32, i32) {
    %c0_i32 = arith.constant 0 : i32
    %c0_i32_0 = arith.constant 0 : i32
    return %arg0, %c0_i32 : i32, i32
  }
}

</mosaic_0001>

<llo_original>
// kernel: tpu_custom_call.1
$region0: #{tpu_custom_call.1}
  #allocation0 [shape = 'u32[]', space=smem, size = 0x4, offset = 0x4, fixed_abs, tag = 'smem constant byte address 0x4 - core index']
  #allocation1 [shape = 'u32[144,128]{1,0:T(1,128)}', space=vmem, size = 0x12000, scoped, tag = 'internal scratch']
  #allocation2 [shape = 'f32[8,384]{1,0:T(8,128)}', space=vmem, size = 0x3000, scoped, tag = 'scratch operand']
  #allocation3 [shape = 'f32[8,384]{1,0:T(8,128)}', space=vmem, size = 0x3000, scoped, tag = 'scratch operand']
  #allocation4 [shape = 'f32[8,384]{1,0:T(8,128)}', space=vmem, size = 0x3000, scoped, tag = 'scratch operand']
  %s0 = inlined_call_operand.hbm [shape: f32[4,16,384], index: 0, kind: input, shape index: {}]
  %s1 = inlined_call_operand.hbm [shape: f32[9,16,384], index: 1, kind: input, shape index: {}]
  %s2 = inlined_call_operand.hbm [shape: f32[4,16,384], index: 2, kind: input, shape index: {}]
  %s3 = inlined_call_operand.hbm [shape: s32[16,384], index: 3, kind: input, shape index: {}]
  %s4 = inlined_call_operand.hbm [shape: f32[6,1,384], index: 4, kind: input, shape index: {}]
  %s5 = inlined_call_operand.vmem [shape: f32[16,1], index: 5, kind: output, shape index: {}]
  %s6 = sld [smem:[#allocation0]]
  $region95: #{tpu_custom_call.1} parent=0
    _
  %s8 = ssub.s32 1, %s6
  %s9 = scalar_select 0, %s8, %s6
  $region1: #{tpu_custom_call.1} parent=0
    #allocation5 [shape = 'u8[98304]{0}', space=vmem, size = 0x18000, scoped, tag = 'input window, operand 0']
    #allocation6 [shape = 's32[2]{0}', space=sflag, size = 0x8, scoped, tag = 'scoped memory for tpu_custom_call.1']
    #allocation7 [shape = 'u8[73728]{0}', space=vmem, size = 0x12000, scoped, tag = 'input window, operand 1']
    #allocation8 [shape = 's32[2]{0}', space=sflag, size = 0x8, scoped, tag = 'scoped memory for tpu_custom_call.1']
    #allocation9 [shape = 'u8[98304]{0}', space=vmem, size = 0x18000, scoped, tag = 'input window, operand 2']
    #allocation10 [shape = 'u8[24576]{0}', space=vmem, size = 0x6000, scoped, tag = 'input window, operand 3']
    #allocation11 [shape = 's32[2]{0}', space=sflag, size = 0x8, scoped, tag = 'scoped memory for tpu_custom_call.1']
    #allocation12 [shape = 'u8[9216]{0}', space=vmem, size = 0x2400, scoped, tag = 'input window, operand 4, single buffered']
    %10 = vsyncpa [#allocation6], 0
    %s11 = scalar_lea.sflag [#allocation6], 1
    %12 = vsyncpa %s11, 0
    %13 = vsyncpa [#allocation8], 0
    %s14 = scalar_lea.sflag [#allocation8], 1
    %15 = vsyncpa %s14, 0
    %16 = vsyncpa [#allocation11], 0
    %s17 = scalar_lea.sflag [#allocation11], 1
    %18 = vsyncpa %s17, 0
    loop: start=0, step=1, limit=8
    $region2: #{tpu_custom_call.1} parent=1 // loop_pre_header
      _
    $region3: #{tpu_custom_call.1} parent=1 // loop_header
      %s20 = sphi 0, %s24
      %p21 = scmp.ge.s32.totalorder %s20, 8
      %s27 = sphi 0, %s39
      %s28 = sphi 0, %s35
      %s29 = sphi 0, %s27
      %s30 = sphi 0, %s28
      %s31 = sphi 0, %s29
      %s32 = sphi 0, %s30
      %s42 = sphi 0, %s44
      %s45 = sphi 0, %s42
      %s46 = sphi 0, %s45
      %s62 = sphi 0, %s46
      %s70 = sphi 0, %s72
      %s73 = sphi 0, %s70
      %s74 = sphi 0, %s73
      %s90 = sphi 0, %s74
      %s96 = sphi 0, %s98
      %s99 = sphi 0, %s96
      %s100 = sphi 0, %s99
      %s116 = sphi 0, %s100
      %s122 = sphi 0, %s124
      %s125 = sphi 0, %s122
      %s126 = sphi 0, %s125
      %s142 = sphi 0, %s126
      %s146 = sphi 0, %s146
      %s148 = sphi 0, %s146
      %s149 = sphi 0, %s148
      %s163 = sphi 0, %s149
      %s169 = sphi 0, %s171
      %s172 = sphi 0, %s169
      %s173 = sphi 0, %s172
      %s189 = sphi 0, %s173
    $region4: #{tpu_custom_call.1} parent=1 // loop_header_branch
      %23 = sbr.rel (%p21) target = $region8
    $region5: #{tpu_custom_call.1} parent=1 // loop_body
      %s25 = ssub.s32 %s20, 1
      %s26 = ssub.s32 %s20, 2
      %s33 = sadd.s32 1, %s28
      %p34 = scmp.ge.s32.totalorder %s33, 3
      %s35 = scalar_select %p34, 0, %s33
      %s36 = sadd.s32 1, %s27
      %s37 = scalar_select %p34, %s36, %s27
      %p38 = scmp.ge.s32.totalorder %s37, 2
      %s39 = scalar_select %p38, 0, %s37
      %s40 = ssub.s32 %s27, %s39
      %p41 = scmp.eq.s32.totalorder %s40, 0
      %s43 = sadd.s32 %s42, 1
      %s44 = scalar_select %p41, %s42, %s43
      %p47 = pneg %p41
      %p48 = scmp.eq.s32.totalorder %s20, 5
      %p49 = por %p47, %p48
      %p50 = scmp.ne.s32.totalorder %s42, %s45
      %p51 = scmp.eq.s32.totalorder %s20, 0
      %p52 = por %p50, %p51
      %p53 = scmp.ne.s32.totalorder %s42, %s45
      %p54 = scmp.eq.s32.totalorder %s25, 5
      %p55 = por %p53, %p54
      %p56 = scmp.ne.s32.totalorder %s45, %s46
      %p57 = scmp.eq.s32.totalorder %s25, 0
      %p58 = por %p56, %p57
      %p59 = scmp.ne.s32.totalorder %s45, %s46
      %p60 = scmp.eq.s32.totalorder %s26, 5
      %p61 = por %p59, %p60
      %p63 = scmp.ne.s32.totalorder %s46, %s62
      %p64 = scmp.eq.s32.totalorder %s26, 0
      %p65 = por %p63, %p64
      %s66 = ssub.s32 %s28, %s35
      %s67 = ssub.s32 %s27, %s39
      %s68 = sor.u32 %s66, %s67
      %p69 = scmp.eq.s32.totalorder %s68, 0
      %s71 = sadd.s32 %s70, 1
      %s72 = scalar_select %p69, %s70, %s71
      %p75 = pneg %p69
      %p76 = scmp.eq.s32.totalorder %s20, 5
      %p77 = por %p75, %p76
      %p78 = scmp.ne.s32.totalorder %s70, %s73
      %p79 = scmp.eq.s32.totalorder %s20, 0
      %p80 = por %p78, %p79
      %p81 = scmp.ne.s32.totalorder %s70, %s73
      %p82 = scmp.eq.s32.totalorder %s25, 5
      %p83 = por %p81, %p82
      %p84 = scmp.ne.s32.totalorder %s73, %s74
      %p85 = scmp.eq.s32.totalorder %s25, 0
      %p86 = por %p84, %p85
      %p87 = scmp.ne.s32.totalorder %s73, %s74
      %p88 = scmp.eq.s32.totalorder %s26, 5
      %p89 = por %p87, %p88
      %p91 = scmp.ne.s32.totalorder %s74, %s90
      %p92 = scmp.eq.s32.totalorder %s26, 0
      %p93 = por %p91, %p92
      %s94 = ssub.s32 %s27, %s39
      %p95 = scmp.eq.s32.totalorder %s94, 0
      %s97 = sadd.s32 %s96, 1
      %s98 = scalar_select %p95, %s96, %s97
      %p101 = pneg %p95
      %p102 = scmp.eq.s32.totalorder %s20, 5
      %p103 = por %p101, %p102
      %p104 = scmp.ne.s32.totalorder %s96, %s99
      %p105 = scmp.eq.s32.totalorder %s20, 0
      %p106 = por %p104, %p105
      %p107 = scmp.ne.s32.totalorder %s96, %s99
      %p108 = scmp.eq.s32.totalorder %s25, 5
      %p109 = por %p107, %p108
      %p110 = scmp.ne.s32.totalorder %s99, %s100
      %p111 = scmp.eq.s32.totalorder %s25, 0
      %p112 = por %p110, %p111
      %p113 = scmp.ne.s32.totalorder %s99, %s100
      %p114 = scmp.eq.s32.totalorder %s26, 5
      %p115 = por %p113, %p114
      %p117 = scmp.ne.s32.totalorder %s100, %s116
      %p118 = scmp.eq.s32.totalorder %s26, 0
      %p119 = por %p117, %p118
      %s120 = ssub.s32 %s27, %s39
      %p121 = scmp.eq.s32.totalorder %s120, 0
      %s123 = sadd.s32 %s122, 1
      %s124 = scalar_select %p121, %s122, %s123
      %p127 = pneg %p121
      %p128 = scmp.eq.s32.totalorder %s20, 5
      %p129 = por %p127, %p128
      %p130 = scmp.ne.s32.totalorder %s122, %s125
      %p131 = scmp.eq.s32.totalorder %s20, 0
      %p132 = por %p130, %p131
      %p133 = scmp.ne.s32.totalorder %s122, %s125
      %p134 = scmp.eq.s32.totalorder %s25, 5
      %p135 = por %p133, %p134
      %p136 = scmp.ne.s32.totalorder %s125, %s126
      %p137 = scmp.eq.s32.totalorder %s25, 0
      %p138 = por %p136, %p137
      %p139 = scmp.ne.s32.totalorder %s125, %s126
      %p140 = scmp.eq.s32.totalorder %s26, 5
      %p141 = por %p139, %p140
      %p143 = scmp.ne.s32.totalorder %s126, %s142
      %p144 = scmp.eq.s32.totalorder %s26, 0
      %p145 = por %p143, %p144
      %s147 = sadd.s32 %s146, 1
      %p150 = scmp.eq.s32.totalorder %s20, 5
      %p151 = scmp.ne.s32.totalorder %s146, %s148
      %p152 = scmp.eq.s32.totalorder %s20, 0
      %p153 = por %p151, %p152
      %p154 = scmp.ne.s32.totalorder %s146, %s148
      %p155 = scmp.eq.s32.totalorder %s25, 5
      %p156 = por %p154, %p155
      %p157 = scmp.ne.s32.totalorder %s148, %s149
      %p158 = scmp.eq.s32.totalorder %s25, 0
      %p159 = por %p157, %p158
      %p160 = scmp.ne.s32.totalorder %s148, %s149
      %p161 = scmp.eq.s32.totalorder %s26, 5
      %p162 = por %p160, %p161
      %p164 = scmp.ne.s32.totalorder %s149, %s163
      %p165 = scmp.eq.s32.totalorder %s26, 0
      %p166 = por %p164, %p165
      %s167 = ssub.s32 %s27, %s39
      %p168 = scmp.eq.s32.totalorder %s167, 0
      %s170 = sadd.s32 %s169, 1
      %s171 = scalar_select %p168, %s169, %s170
      %p174 = pneg %p168
      %p175 = scmp.eq.s32.totalorder %s20, 5
      %p176 = por %p174, %p175
      %p177 = scmp.ne.s32.totalorder %s169, %s172
      %p178 = scmp.eq.s32.totalorder %s20, 0
      %p179 = por %p177, %p178
      %p180 = scmp.ne.s32.totalorder %s169, %s172
      %p181 = scmp.eq.s32.totalorder %s25, 5
      %p182 = por %p180, %p181
      %p183 = scmp.ne.s32.totalorder %s172, %s173
      %p184 = scmp.eq.s32.totalorder %s25, 0
      %p185 = por %p183, %p184
      %p186 = scmp.ne.s32.totalorder %s172, %s173
      %p187 = scmp.eq.s32.totalorder %s26, 5
      %p188 = por %p186, %p187
      %p190 = scmp.ne.s32.totalorder %s173, %s189
      %p191 = scmp.eq.s32.totalorder %s26, 0
      %p192 = por %p190, %p191
      %p193 = scmp.le.s32.totalorder 1, %s20
      %p194 = scmp.lt.s32.totalorder %s20, 7
      %p195 = pnand %p193, %p194
      %p196 = pneg %p195
      // Predicated region
      $region9: #{tpu_custom_call.1} parent=5 // pred_check
        _
      $region10: #{tpu_custom_call.1} parent=5 // pred_check_branch
        %198 = sbr.rel (%p195) target = $region12
      $region11: #{tpu_custom_call.1} parent=5 // pred_region
        %s199 = ssub.s32 %s20, 1
        // Predicated region
        $region13: #{tpu_custom_call.1} parent=11 // pred_check
          %p200 = pneg %p159
        $region14: #{tpu_custom_call.1} parent=11 // pred_check_branch
          %202 = sbr.rel (%p200) target = $region16
        $region15: #{tpu_custom_call.1} parent=11 // pred_region
          %s204 = ssub.s32 288, 288
          %205 = vsyncadd [#allocation11], %s204
          %s206 = sshll.u32 [#allocation12], 4
          %s207 = int_to_ptr.vmem [resolvable:$true] %s206
          %212 = dma.hbm_to_vmem [thread:$0]  %s4, 288, %s207, [#allocation11], 48, 48, 3
        $region16: #{tpu_custom_call.1} parent=11 // pred_fallthru
          _
      $region12: #{tpu_custom_call.1} parent=5 // pred_fallthru
        _
      %p213 = scmp.lt.s32.totalorder %s20, 6
      // Predicated region
      $region17: #{tpu_custom_call.1} parent=5 // pred_check
        %p214 = pneg %p213
      $region18: #{tpu_custom_call.1} parent=5 // pred_check_branch
        %216 = sbr.rel (%p214) target = $region20
      $region19: #{tpu_custom_call.1} parent=5 // pred_region
        // Predicated region
        $region21: #{tpu_custom_call.1} parent=19 // pred_check
          %p217 = pneg %p52
        $region22: #{tpu_custom_call.1} parent=19 // pred_check_branch
          %219 = sbr.rel (%p217) target = $region24
        $region23: #{tpu_custom_call.1} parent=19 // pred_region
          %s220 = sand.u32 %s42, 1
          %s221 = scalar_lea.sflag [#allocation6], %s220
          %s222 = sand.u32 %s42, 1
          %s223 = smul.addr %s222, 96
          %s224 = scalar_lea.vmem [#allocation5], %s223
          %s226 = ssub.s32 1536, 1536
          %227 = vsyncadd %s221, %s226
          %s228 = smul.addr %s27, 3
          %s229 = smul.addr %s228, 128
          %s230 = scalar_lea.hbm %s0, %s229
          %s231 = sshll.u32 %s224, 4
          %s232 = int_to_ptr.vmem [resolvable:$true] %s231
          %237 = dma.hbm_to_vmem [thread:$0]  %s230, 1536, %s232, %s221, 768, 384, 24
        $region24: #{tpu_custom_call.1} parent=19 // pred_fallthru
          _
        // Predicated region
        $region25: #{tpu_custom_call.1} parent=19 // pred_check
          %p238 = pneg %p80
        $region26: #{tpu_custom_call.1} parent=19 // pred_check_branch
          %240 = sbr.rel (%p238) target = $region28
        $region27: #{tpu_custom_call.1} parent=19 // pred_region
          %s241 = sand.u32 %s20, 1
          %s242 = scalar_lea.sflag [#allocation8], %s241
          %s243 = sand.u32 %s70, 1
          %s244 = smul.addr %s243, 72
          %s245 = scalar_lea.vmem [#allocation7], %s244
          %s246 = smul.u32 3, %s28
          %s248 = ssub.s32 1152, 1152
          %249 = vsyncadd %s242, %s248
          %s250 = smul.addr %s27, 3
          %s251 = smul.addr %s246, 6
          %s252 = sadd.s32 %s250, %s251
          %s253 = smul.addr %s252, 128
          %s254 = scalar_lea.hbm %s1, %s253
          %s255 = sshll.u32 %s245, 4
          %s256 = int_to_ptr.vmem [resolvable:$true] %s255
          %261 = dma.hbm_to_vmem [thread:$0]  %s254, 1152, %s256, %s242, 768, 384, 24
        $region28: #{tpu_custom_call.1} parent=19 // pred_fallthru
          _
        // Predicated region
        $region29: #{tpu_custom_call.1} parent=19 // pred_check
          %p262 = pneg %p106
        $region30: #{tpu_custom_call.1} parent=19 // pred_check_branch
          %264 = sbr.rel (%p262) target = $region32
        $region31: #{tpu_custom_call.1} parent=19 // pred_region
          %s265 = sand.u32 %s20, 1
          %s266 = scalar_lea.sflag [#allocation8], %s265
          %s267 = sand.u32 %s96, 1
          %s268 = smul.addr %s267, 96
          %s269 = scalar_lea.vmem [#allocation9], %s268
          %s271 = ssub.s32 1536, 1536
          %272 = vsyncadd %s266, %s271
          %s273 = smul.addr %s27, 3
          %s274 = smul.addr %s273, 128
          %s275 = scalar_lea.hbm %s2, %s274
          %s276 = sshll.u32 %s269, 4
          %s277 = int_to_ptr.vmem [resolvable:$true] %s276
          %282 = dma.hbm_to_vmem [thread:$0]  %s275, 1536, %s277, %s266, 768, 384, 24
        $region32: #{tpu_custom_call.1} parent=19 // pred_fallthru
          _
        // Predicated region
        $region33: #{tpu_custom_call.1} parent=19 // pred_check
          %p283 = pneg %p132
        $region34: #{tpu_custom_call.1} parent=19 // pred_check_branch
          %285 = sbr.rel (%p283) target = $region36
        $region35: #{tpu_custom_call.1} parent=19 // pred_region
          %s286 = sand.u32 %s20, 1
          %s287 = scalar_lea.sflag [#allocation11], %s286
          %s288 = sand.u32 %s122, 1
          %s289 = smul.addr %s288, 24
          %s290 = scalar_lea.vmem [#allocation10], %s289
          %s292 = ssub.s32 384, 384
          %293 = vsyncadd %s287, %s292
          %s294 = smul.addr %s27, 3
          %s295 = smul.addr %s294, 128
          %s296 = scalar_lea.hbm %s3, %s295
          %s298 = sshll.u32 %s290, 4
          %s299 = int_to_ptr.vmem [resolvable:$true] %s298
          %301 = dma.hbm_to_vmem [thread:$0]  %s296, 384, %s299, %s287
        $region36: #{tpu_custom_call.1} parent=19 // pred_fallthru
          _
      $region20: #{tpu_custom_call.1} parent=5 // pred_fallthru
        _
      %p302 = scmp.le.s32.totalorder 1, %s20
      %p303 = scmp.lt.s32.totalorder %s20, 7
      %p304 = pnand %p302, %p303
      %p305 = pneg %p304
      // Predicated region
      $region37: #{tpu_custom_call.1} parent=5 // pred_check
        _
      $region38: #{tpu_custom_call.1} parent=5 // pred_check_branch
        %307 = sbr.rel (%p304) target = $region40
      $region39: #{tpu_custom_call.1} parent=5 // pred_region
        %s308 = ssub.s32 %s20, 1
        %s309 = sand.u32 %s45, 1
        %s310 = scalar_lea.sflag [#allocation6], %s309
        %s311 = sand.u32 %s45, 1
        %s312 = smul.addr %s311, 96
        %s313 = scalar_lea.vmem [#allocation5], %s312
        // Predicated region
        $region41: #{tpu_custom_call.1} parent=39 // pred_check
          %p314 = pneg %p58
        $region42: #{tpu_custom_call.1} parent=39 // pred_check_branch
          %316 = sbr.rel (%p314) target = $region44
        $region43: #{tpu_custom_call.1} parent=39 // pred_region
          %317 = dma.done %s310, 1536
        $region44: #{tpu_custom_call.1} parent=39 // pred_fallthru
          _
        %s318 = sand.u32 %s25, 1
        %s319 = scalar_lea.sflag [#allocation8], %s318
        %s320 = sand.u32 %s73, 1
        %s321 = smul.addr %s320, 72
        %s322 = scalar_lea.vmem [#allocation7], %s321
        // Predicated region
        $region45: #{tpu_custom_call.1} parent=39 // pred_check
          %p323 = pneg %p86
        $region46: #{tpu_custom_call.1} parent=39 // pred_check_branch
          %325 = sbr.rel (%p323) target = $region48
        $region47: #{tpu_custom_call.1} parent=39 // pred_region
          %326 = dma.done %s319, 1152
        $region48: #{tpu_custom_call.1} parent=39 // pred_fallthru
          _
        %s327 = sand.u32 %s25, 1
        %s328 = scalar_lea.sflag [#allocation8], %s327
        %s329 = sand.u32 %s99, 1
        %s330 = smul.addr %s329, 96
        %s331 = scalar_lea.vmem [#allocation9], %s330
        // Predicated region
        $region49: #{tpu_custom_call.1} parent=39 // pred_check
          %p332 = pneg %p112
        $region50: #{tpu_custom_call.1} parent=39 // pred_check_branch
          %334 = sbr.rel (%p332) target = $region52
        $region51: #{tpu_custom_call.1} parent=39 // pred_region
          %335 = dma.done %s328, 1536
        $region52: #{tpu_custom_call.1} parent=39 // pred_fallthru
          _
        %s336 = sand.u32 %s25, 1
        %s337 = scalar_lea.sflag [#allocation11], %s336
        %s338 = sand.u32 %s125, 1
        %s339 = smul.addr %s338, 24
        %s340 = scalar_lea.vmem [#allocation10], %s339
        // Predicated region
        $region53: #{tpu_custom_call.1} parent=39 // pred_check
          %p341 = pneg %p138
        $region54: #{tpu_custom_call.1} parent=39 // pred_check_branch
          %343 = sbr.rel (%p341) target = $region56
        $region55: #{tpu_custom_call.1} parent=39 // pred_region
          %344 = dma.done %s337, 384
        $region56: #{tpu_custom_call.1} parent=39 // pred_fallthru
          _
        // Predicated region
        $region57: #{tpu_custom_call.1} parent=39 // pred_check
          %p345 = pneg %p159
        $region58: #{tpu_custom_call.1} parent=39 // pred_check_branch
          %347 = sbr.rel (%p345) target = $region60
        $region59: #{tpu_custom_call.1} parent=39 // pred_region
          %348 = dma.done [#allocation11], 288
        $region60: #{tpu_custom_call.1} parent=39 // pred_fallthru
          _
        %s349 = sand.u32 %s45, 1
        %s350 = scalar_lea.sflag [#allocation6], %s349
        %s351 = sand.u32 %s45, 1
        %s352 = smul.addr %s351, 96
        %s353 = scalar_lea.vmem [#allocation5], %s352
        %p354 = pneg %p58
        %p355 = pneg %p55
        %s356 = sand.u32 %s25, 1
        %s357 = scalar_lea.sflag [#allocation8], %s356
        %s358 = sand.u32 %s73, 1
        %s359 = smul.addr %s358, 72
        %s360 = scalar_lea.vmem [#allocation7], %s359
        %p361 = pneg %p86
        %p362 = pneg %p83
        %s363 = sand.u32 %s25, 1
        %s364 = scalar_lea.sflag [#allocation8], %s363
        %s365 = sand.u32 %s99, 1
        %s366 = smul.addr %s365, 96
        %s367 = scalar_lea.vmem [#allocation9], %s366
        %p368 = pneg %p112
        %p369 = pneg %p109
        %s370 = sand.u32 %s25, 1
        %s371 = scalar_lea.sflag [#allocation11], %s370
        %s372 = sand.u32 %s125, 1
        %s373 = smul.addr %s372, 24
        %s374 = scalar_lea.vmem [#allocation10], %s373
        %p375 = pneg %p138
        %p376 = pneg %p135
        %p377 = pneg %p159
        %p378 = pneg %p156
        %p379 = pneg %p185
        %p380 = pneg %p182
        %p381 = scmp.lt.s32.totalorder %s29, 1
        %s382 = scalar_select %p381, %s29, 1
        %s383 = smul.addr %s382, 8
        %s384 = scalar_lea.vmem %s5, %s383
        %s385 = smul.u32 3, %s30
        %p386 = scmp.lt.s32.totalorder %s29, 1
        %s387 = scalar_select %p386, %s29, 1
        %s388 = smul.addr %s387, 8
        %s389 = scalar_lea.vmem %s5, %s388
        %v390 = vld [vmem:[%s340] sm:$0xff]
        %v391 = vld [vmem:[%s340 + $0x8] sm:$0xff]
        %v392 = vld [vmem:[%s340 + $0x10] sm:$0xff]
        %p393 = scmp.eq.s32.totalorder %s30, 0
        // Predicated region
        $region61: #{tpu_custom_call.1} parent=39 // pred_check
          %p394 = pneg %p393
        $region62: #{tpu_custom_call.1} parent=39 // pred_check_branch
          %396 = sbr.rel (%p394) target = $region64
        $region63: #{tpu_custom_call.1} parent=39 // pred_region
          %397 = vst [vmem:[#allocation2] sm:$0xff] -1e+30
          %398 = vst [vmem:[#allocation2 + $0x8] sm:$0xff] -1e+30
          %399 = vst [vmem:[#allocation2 + $0x10] sm:$0xff] -1e+30
          %400 = vst [vmem:[#allocation3] sm:$0xff] 0.0
          %401 = vst [vmem:[#allocation3 + $0x8] sm:$0xff] 0.0
          %402 = vst [vmem:[#allocation3 + $0x10] sm:$0xff] 0.0
          %403 = vst [vmem:[#allocation4] sm:$0xff] 0.0
          %404 = vst [vmem:[#allocation4 + $0x8] sm:$0xff] 0.0
          %405 = vst [vmem:[#allocation4 + $0x10] sm:$0xff] 0.0
        $region64: #{tpu_custom_call.1} parent=39 // pred_fallthru
          _
        %v406 = vld [vmem:[%s322] sm:$0xff]
        %v407 = vld [vmem:[%s322 + $0x8] sm:$0xff]
        %v408 = vld [vmem:[%s322 + $0x10] sm:$0xff]
        %v409 = vld [vmem:[%s322 + $0x18] sm:$0xff]
        %v410 = vld [vmem:[%s322 + $0x20] sm:$0xff]
        %v411 = vld [vmem:[%s322 + $0x28] sm:$0xff]
        %v412 = vld [vmem:[%s322 + $0x30] sm:$0xff]
        %v413 = vld [vmem:[%s322 + $0x38] sm:$0xff]
        %v414 = vld [vmem:[%s322 + $0x40] sm:$0xff]
        %v415 = vld [vmem:[#allocation2] sm:$0xff]
        %v416 = vld [vmem:[#allocation2 + $0x8] sm:$0xff]
        %v417 = vld [vmem:[#allocation2 + $0x10] sm:$0xff]
        %v418 = vmax.f32 %v406, %v412
        %v419 = vmax.f32 %v418, %v409
        %v420 = vmax.f32 %v407, %v413
        %v421 = vmax.f32 %v420, %v410
        %v422 = vmax.f32 %v408, %v414
        %v423 = vmax.f32 %v422, %v411
        %v424 = vmax.f32 %v415, %v419
        %v425 = vmax.f32 %v416, %v421
        %v426 = vmax.f32 %v417, %v423
        %v427 = vld [vmem:[#allocation3] sm:$0xff]
        %v428 = vld [vmem:[#allocation3 + $0x8] sm:$0xff]
        %v429 = vld [vmem:[#allocation3 + $0x10] sm:$0xff]
        %v430 = vsub.f32 %v415, %v424
        %v431 = vsub.f32 %v416, %v425
        %v432 = vsub.f32 %v417, %v426
        %v433 = vmul.f32 %v430, 1.442695
        %v434 = vpow.pop %v433
        %v435 = vmul.f32 %v431, 1.442695
        %v436 = vpow.pop %v435
        %v437 = vmul.f32 %v432, 1.442695
        %v438 = vpow.pop %v437
        %v439 = vmul.f32 %v427, %v434
        %v440 = vmul.f32 %v428, %v436
        %v441 = vmul.f32 %v429, %v438
        %v442 = vsub.f32 %v406, %v424
        %v443 = vsub.f32 %v407, %v425
        %v444 = vsub.f32 %v408, %v426
        %v445 = vsub.f32 %v409, %v424
        %v446 = vsub.f32 %v410, %v425
        %v447 = vsub.f32 %v411, %v426
        %v448 = vsub.f32 %v412, %v424
        %v449 = vsub.f32 %v413, %v425
        %v450 = vsub.f32 %v414, %v426
        %v451 = vmul.f32 %v442, 1.442695
        %v452 = vpow.pop %v451
        %v453 = vmul.f32 %v443, 1.442695
        %v454 = vpow.pop %v453
        %v455 = vmul.f32 %v444, 1.442695
        %v456 = vpow.pop %v455
        %v457 = vmul.f32 %v445, 1.442695
        %v458 = vpow.pop %v457
        %v459 = vmul.f32 %v446, 1.442695
        %v460 = vpow.pop %v459
        %v461 = vmul.f32 %v447, 1.442695
        %v462 = vpow.pop %v461
        %v463 = vmul.f32 %v448, 1.442695
        %v464 = vpow.pop %v463
        %v465 = vmul.f32 %v449, 1.442695
        %v466 = vpow.pop %v465
        %v467 = vmul.f32 %v450, 1.442695
        %v468 = vpow.pop %v467
        %v469 = vadd.f32 %v452, %v458
        %v470 = vadd.f32 %v469, %v464
        %v471 = vadd.f32 %v454, %v460
        %v472 = vadd.f32 %v471, %v466
        %v473 = vadd.f32 %v456, %v462
        %v474 = vadd.f32 %v473, %v468
        %v475 = vadd.f32 %v439, %v470
        %v476 = vadd.f32 %v440, %v472
        %v477 = vadd.f32 %v441, %v474
        %478 = vst [vmem:[#allocation3] sm:$0xff] %v475
        %479 = vst [vmem:[#allocation3 + $0x8] sm:$0xff] %v476
        %480 = vst [vmem:[#allocation3 + $0x10] sm:$0xff] %v477
        %481 = vst [vmem:[#allocation2] sm:$0xff] %v424
        %482 = vst [vmem:[#allocation2 + $0x8] sm:$0xff] %v425
        %483 = vst [vmem:[#allocation2 + $0x10] sm:$0xff] %v426
        %s484 = smul.u32 %s30, 3
        %v485 = vstv %s484
        %v486 = vadd.s32 %v485, 1
        %v487 = vadd.s32 %v485, 2
        %v488 = vld [vmem:[#allocation4] sm:$0xff]
        %v489 = vld [vmem:[#allocation4 + $0x8] sm:$0xff]
        %v490 = vld [vmem:[#allocation4 + $0x10] sm:$0xff]
        %vm491 = vcmp.eq.s32.totalorder %v485, %v390
        %vm492 = vcmp.eq.s32.totalorder %v485, %v391
        %vm493 = vcmp.eq.s32.totalorder %v485, %v392
        %vm494 = vcmp.eq.s32.totalorder %v486, %v390
        %vm495 = vcmp.eq.s32.totalorder %v486, %v391
        %vm496 = vcmp.eq.s32.totalorder %v486, %v392
        %vm497 = vcmp.eq.s32.totalorder %v487, %v390
        %vm498 = vcmp.eq.s32.totalorder %v487, %v391
        %vm499 = vcmp.eq.s32.totalorder %v487, %v392
        %v500 = vsel %vm491, %v406, 0.0
        %v501 = vsel %vm492, %v407, 0.0
        %v502 = vsel %vm493, %v408, 0.0
        %v503 = vsel %vm494, %v409, 0.0
        %v504 = vsel %vm495, %v410, 0.0
        %v505 = vsel %vm496, %v411, 0.0
        %v506 = vsel %vm497, %v412, 0.0
        %v507 = vsel %vm498, %v413, 0.0
        %v508 = vsel %vm499, %v414, 0.0
        %v509 = vadd.f32 %v500, %v503
        %v510 = vadd.f32 %v509, %v506
        %v511 = vadd.f32 %v501, %v504
        %v512 = vadd.f32 %v511, %v507
        %v513 = vadd.f32 %v502, %v505
        %v514 = vadd.f32 %v513, %v508
        %v515 = vadd.f32 %v488, %v510
        %v516 = vadd.f32 %v489, %v512
        %v517 = vadd.f32 %v490, %v514
        %518 = vst [vmem:[#allocation4] sm:$0xff] %v515
        %519 = vst [vmem:[#allocation4 + $0x8] sm:$0xff] %v516
        %520 = vst [vmem:[#allocation4 + $0x10] sm:$0xff] %v517
        %p521 = scmp.eq.s32.totalorder %s30, 2
        // Predicated region
        $region65: #{tpu_custom_call.1} parent=39 // pred_check
          %p522 = pneg %p521
        $region66: #{tpu_custom_call.1} parent=39 // pred_check_branch
          %524 = sbr.rel (%p522) target = $region68
        $region67: #{tpu_custom_call.1} parent=39 // pred_region
          %v525 = vld [vmem:[%s313] sm:$0xff]
          %v526 = vld [vmem:[%s313 + $0x8] sm:$0xff]
          %v527 = vld [vmem:[%s313 + $0x10] sm:$0xff]
          %v528 = vld [vmem:[%s313 + $0x18] sm:$0xff]
          %v529 = vld [vmem:[%s313 + $0x20] sm:$0xff]
          %v530 = vld [vmem:[%s313 + $0x28] sm:$0xff]
          %v531 = vld [vmem:[%s313 + $0x30] sm:$0xff]
          %v532 = vld [vmem:[%s313 + $0x38] sm:$0xff]
          %v533 = vld [vmem:[%s313 + $0x40] sm:$0xff]
          %v534 = vld [vmem:[%s313 + $0x48] sm:$0xff]
          %v535 = vld [vmem:[%s313 + $0x50] sm:$0xff]
          %v536 = vld [vmem:[%s313 + $0x58] sm:$0xff]
          %v537 = vld [vmem:[%s331] sm:$0xff]
          %v538 = vld [vmem:[%s331 + $0x8] sm:$0xff]
          %v539 = vld [vmem:[%s331 + $0x10] sm:$0xff]
          %v540 = vld [vmem:[%s331 + $0x18] sm:$0xff]
          %v541 = vld [vmem:[%s331 + $0x20] sm:$0xff]
          %v542 = vld [vmem:[%s331 + $0x28] sm:$0xff]
          %v543 = vld [vmem:[%s331 + $0x30] sm:$0xff]
          %v544 = vld [vmem:[%s331 + $0x38] sm:$0xff]
          %v545 = vld [vmem:[%s331 + $0x40] sm:$0xff]
          %v546 = vld [vmem:[%s331 + $0x48] sm:$0xff]
          %v547 = vld [vmem:[%s331 + $0x50] sm:$0xff]
          %v548 = vld [vmem:[%s331 + $0x58] sm:$0xff]
          %v549 = vld [vmem:[#allocation12] sm:$0x7]
          %v550 = vld [vmem:[#allocation12 + $0x3] sm:$0x7]
          %v551 = vld [vmem:[#allocation12 + $0x6] sm:$0x7]
          %v552 = vld [vmem:[#allocation12 + $0x9] sm:$0x7]
          %v553 = vld [vmem:[#allocation12 + $0xc] sm:$0x7]
          %v554 = vld [vmem:[#allocation12 + $0xf] sm:$0x7]
          %vm555 = vcmp.gt.s32.totalorder %v390, 0
          %vm556 = vcmp.gt.s32.totalorder %v391, 0
          %vm557 = vcmp.gt.s32.totalorder %v392, 0
          %v558 = vsel %vm555, 1, 0
          %v559 = vsel %vm556, 1, 0
          %v560 = vsel %vm557, 1, 0
          %v561 = vcvt.s32.f32 %v558
          %v562 = vcvt.s32.f32 %v559
          %v563 = vcvt.s32.f32 %v560
          %v564 = vadd.f32 %v561, %v562
          %v565 = vadd.f32 %v564, %v563
          %566 = vadd.xlane.f32.xlu0 %v565
          %v567 = vpop.xlane.xlu0 %566
          %v570 = vlaneseq
          %v571 = vshrl.u32 %v570, 7
          %v572 = vsub.s32 0, %v571
          %v573 = vrot.slane %v549, %v572
          %v574 = vlaneseq
          %v575 = vshrl.u32 %v574, 7
          %v576 = vsub.s32 1, %v575
          %v577 = vrot.slane %v549, %v576
          %v578 = vlaneseq
          %v579 = vshrl.u32 %v578, 7
          %v580 = vsub.s32 2, %v579
          %v581 = vrot.slane %v549, %v580
          %v582 = vlaneseq
          %v583 = vshrl.u32 %v582, 7
          %v584 = vsub.s32 0, %v583
          %v585 = vrot.slane %v550, %v584
          %v586 = vlaneseq
          %v587 = vshrl.u32 %v586, 7
          %v588 = vsub.s32 1, %v587
          %v589 = vrot.slane %v550, %v588
          %v590 = vlaneseq
          %v591 = vshrl.u32 %v590, 7
          %v592 = vsub.s32 2, %v591
          %v593 = vrot.slane %v550, %v592
          %v600 = vmul.f32 %v537, %v573
          %v601 = vmul.f32 %v538, %v577
          %v602 = vmul.f32 %v539, %v581
          %v603 = vmul.f32 %v540, %v585
          %v604 = vmul.f32 %v541, %v589
          %v605 = vmul.f32 %v542, %v593
          %v608 = vlaneseq
          %v609 = vshrl.u32 %v608, 7
          %v610 = vsub.s32 0, %v609
          %v611 = vrot.slane %v551, %v610
          %v612 = vlaneseq
          %v613 = vshrl.u32 %v612, 7
          %v614 = vsub.s32 1, %v613
          %v615 = vrot.slane %v551, %v614
          %v616 = vlaneseq
          %v617 = vshrl.u32 %v616, 7
          %v618 = vsub.s32 2, %v617
          %v619 = vrot.slane %v551, %v618
          %v620 = vlaneseq
          %v621 = vshrl.u32 %v620, 7
          %v622 = vsub.s32 0, %v621
          %v623 = vrot.slane %v552, %v622
          %v624 = vlaneseq
          %v625 = vshrl.u32 %v624, 7
          %v626 = vsub.s32 1, %v625
          %v627 = vrot.slane %v552, %v626
          %v628 = vlaneseq
          %v629 = vshrl.u32 %v628, 7
          %v630 = vsub.s32 2, %v629
          %v631 = vrot.slane %v552, %v630
          %v638 = vsub.f32 %v600, %v611
          %v639 = vsub.f32 %v601, %v615
          %v640 = vsub.f32 %v602, %v619
          %v641 = vsub.f32 %v603, %v623
          %v642 = vsub.f32 %v604, %v627
          %v643 = vsub.f32 %v605, %v631
          %v644 = vlog2.pop %v543
          %v645 = vmul.f32 %v644, 0.6931472
          %v646 = vlog2.pop %v544
          %v647 = vmul.f32 %v646, 0.6931472
          %v648 = vlog2.pop %v545
          %v649 = vmul.f32 %v648, 0.6931472
          %v650 = vlog2.pop %v546
          %v651 = vmul.f32 %v650, 0.6931472
          %v652 = vlog2.pop %v547
          %v653 = vmul.f32 %v652, 0.6931472
          %v654 = vlog2.pop %v548
          %v655 = vmul.f32 %v654, 0.6931472
          %v656 = vmul.f32 %v645, 5.0
          %v657 = vmul.f32 %v647, 5.0
          %v658 = vmul.f32 %v649, 5.0
          %v659 = vmul.f32 %v651, 5.0
          %v660 = vmul.f32 %v653, 5.0
          %v661 = vmul.f32 %v655, 5.0
          %v664 = vlaneseq
          %v665 = vshrl.u32 %v664, 7
          %v666 = vsub.s32 0, %v665
          %v667 = vrot.slane %v553, %v666
          %v668 = vlaneseq
          %v669 = vshrl.u32 %v668, 7
          %v670 = vsub.s32 1, %v669
          %v671 = vrot.slane %v553, %v670
          %v672 = vlaneseq
          %v673 = vshrl.u32 %v672, 7
          %v674 = vsub.s32 2, %v673
          %v675 = vrot.slane %v553, %v674
          %v676 = vlaneseq
          %v677 = vshrl.u32 %v676, 7
          %v678 = vsub.s32 0, %v677
          %v679 = vrot.slane %v554, %v678
          %v680 = vlaneseq
          %v681 = vshrl.u32 %v680, 7
          %v682 = vsub.s32 1, %v681
          %v683 = vrot.slane %v554, %v682
          %v684 = vlaneseq
          %v685 = vshrl.u32 %v684, 7
          %v686 = vsub.s32 2, %v685
          %v687 = vrot.slane %v554, %v686
          %v694 = vsub.f32 %v656, %v667
          %v695 = vsub.f32 %v657, %v671
          %v696 = vsub.f32 %v658, %v675
          %v697 = vsub.f32 %v659, %v679
          %v698 = vsub.f32 %v660, %v683
          %v699 = vsub.f32 %v661, %v687
          %v700 = vsub.f32 %v525, %v638
          %v701 = vsub.f32 %v526, %v639
          %v702 = vsub.f32 %v527, %v640
          %v703 = vsub.f32 %v528, %v641
          %v704 = vsub.f32 %v529, %v642
          %v705 = vsub.f32 %v530, %v643
          %v706 = vand.u32 2147483647, %v700
          %v707 = vand.u32 2147483647, %v701
          %v708 = vand.u32 2147483647, %v702
          %v709 = vand.u32 2147483647, %v703
          %v710 = vand.u32 2147483647, %v704
          %v711 = vand.u32 2147483647, %v705
          %vm712 = vcmp.lt.f32.partialorder %v706, 1.0
          %vm713 = vcmp.lt.f32.partialorder %v707, 1.0
          %vm714 = vcmp.lt.f32.partialorder %v708, 1.0
          %vm715 = vcmp.lt.f32.partialorder %v709, 1.0
          %vm716 = vcmp.lt.f32.partialorder %v710, 1.0
          %vm717 = vcmp.lt.f32.partialorder %v711, 1.0
          %v718 = vmul.f32 %v706, 0.5
          %v719 = vmul.f32 %v707, 0.5
          %v720 = vmul.f32 %v708, 0.5
          %v721 = vmul.f32 %v709, 0.5
          %v722 = vmul.f32 %v710, 0.5
          %v723 = vmul.f32 %v711, 0.5
          %v724 = vmul.f32 %v718, %v706
          %v725 = vmul.f32 %v719, %v707
          %v726 = vmul.f32 %v720, %v708
          %v727 = vmul.f32 %v721, %v709
          %v728 = vmul.f32 %v722, %v710
          %v729 = vmul.f32 %v723, %v711
          %v730 = vsub.f32 %v706, 0.5
          %v731 = vsub.f32 %v707, 0.5
          %v732 = vsub.f32 %v708, 0.5
          %v733 = vsub.f32 %v709, 0.5
          %v734 = vsub.f32 %v710, 0.5
          %v735 = vsub.f32 %v711, 0.5
          %v736 = vsel %vm712, %v724, %v730
          %v737 = vsel %vm713, %v725, %v731
          %v738 = vsel %vm714, %v726, %v732
          %v739 = vsel %vm715, %v727, %v733
          %v740 = vsel %vm716, %v728, %v734
          %v741 = vsel %vm717, %v729, %v735
          %v742 = vadd.f32 %v736, %v739
          %v743 = vadd.f32 %v737, %v740
          %v744 = vadd.f32 %v738, %v741
          %v745 = vsub.f32 %v531, %v694
          %v746 = vsub.f32 %v532, %v695
          %v747 = vsub.f32 %v533, %v696
          %v748 = vsub.f32 %v534, %v697
          %v749 = vsub.f32 %v535, %v698
          %v750 = vsub.f32 %v536, %v699
          %v751 = vand.u32 2147483647, %v745
          %v752 = vand.u32 2147483647, %v746
          %v753 = vand.u32 2147483647, %v747
          %v754 = vand.u32 2147483647, %v748
          %v755 = vand.u32 2147483647, %v749
          %v756 = vand.u32 2147483647, %v750
          %vm757 = vcmp.lt.f32.partialorder %v751, 1.0
          %vm758 = vcmp.lt.f32.partialorder %v752, 1.0
          %vm759 = vcmp.lt.f32.partialorder %v753, 1.0
          %vm760 = vcmp.lt.f32.partialorder %v754, 1.0
          %vm761 = vcmp.lt.f32.partialorder %v755, 1.0
          %vm762 = vcmp.lt.f32.partialorder %v756, 1.0
          %v763 = vmul.f32 %v751, 0.5
          %v764 = vmul.f32 %v752, 0.5
          %v765 = vmul.f32 %v753, 0.5
          %v766 = vmul.f32 %v754, 0.5
          %v767 = vmul.f32 %v755, 0.5
          %v768 = vmul.f32 %v756, 0.5
          %v769 = vmul.f32 %v763, %v751
          %v770 = vmul.f32 %v764, %v752
          %v771 = vmul.f32 %v765, %v753
          %v772 = vmul.f32 %v766, %v754
          %v773 = vmul.f32 %v767, %v755
          %v774 = vmul.f32 %v768, %v756
          %v775 = vsub.f32 %v751, 0.5
          %v776 = vsub.f32 %v752, 0.5
          %v777 = vsub.f32 %v753, 0.5
          %v778 = vsub.f32 %v754, 0.5
          %v779 = vsub.f32 %v755, 0.5
          %v780 = vsub.f32 %v756, 0.5
          %v781 = vsel %vm757, %v769, %v775
          %v782 = vsel %vm758, %v770, %v776
          %v783 = vsel %vm759, %v771, %v777
          %v784 = vsel %vm760, %v772, %v778
          %v785 = vsel %vm761, %v773, %v779
          %v786 = vsel %vm762, %v774, %v780
          %v787 = vadd.f32 %v781, %v784
          %v788 = vadd.f32 %v782, %v785
          %v789 = vadd.f32 %v783, %v786
          %v790 = vadd.f32 %v742, %v787
          %v791 = vadd.f32 %v743, %v788
          %v792 = vadd.f32 %v744, %v789
          %v793 = vmul.f32 %v561, %v790
          %v794 = vmul.f32 %v562, %v791
          %v795 = vmul.f32 %v563, %v792
          %v796 = vadd.f32 %v793, %v794
          %v797 = vadd.f32 %v796, %v795
          %798 = vadd.xlane.f32.xlu0 %v797
          %v799 = vpop.xlane.xlu0 %798
          %v800 = vld [vmem:[#allocation2] sm:$0xff]
          %v801 = vld [vmem:[#allocation2 + $0x8] sm:$0xff]
          %v802 = vld [vmem:[#allocation2 + $0x10] sm:$0xff]
          %v803 = vld [vmem:[#allocation3] sm:$0xff]
          %v804 = vld [vmem:[#allocation3 + $0x8] sm:$0xff]
          %v805 = vld [vmem:[#allocation3 + $0x10] sm:$0xff]
          %v806 = vlog2.pop %v803
          %v807 = vmul.f32 %v806, 0.6931472
          %v808 = vlog2.pop %v804
          %v809 = vmul.f32 %v808, 0.6931472
          %v810 = vlog2.pop %v805
          %v811 = vmul.f32 %v810, 0.6931472
          %v812 = vadd.f32 %v800, %v807
          %v813 = vadd.f32 %v801, %v809
          %v814 = vadd.f32 %v802, %v811
          %v815 = vld [vmem:[#allocation4] sm:$0xff]
          %v816 = vld [vmem:[#allocation4 + $0x8] sm:$0xff]
          %v817 = vld [vmem:[#allocation4 + $0x10] sm:$0xff]
          %v818 = vsub.f32 %v812, %v815
          %v819 = vsub.f32 %v813, %v816
          %v820 = vsub.f32 %v814, %v817
          %v821 = vsel %vm555, 0.0, %v818
          %v822 = vsel %vm556, 0.0, %v819
          %v823 = vsel %vm557, 0.0, %v820
          %v824 = vlaneseq
          %v825 = vand.u32 %v824, 127
          %v826 = vadd.s32 %v825, 128
          %v827 = vadd.s32 %v825, 256
          %v828 = vmax.f32 %v821, 0.0
          %v829 = vmax.f32 %v822, 0.0
          %v830 = vmax.f32 %v823, 0.0
          %vm834 = vcmp.lt.s32.totalorder %v825, 300
          %vm835 = vcmp.lt.s32.totalorder %v826, 300
          %vm836 = vcmp.lt.s32.totalorder %v827, 300
          %v837 = vsel %vm834, %v828, 4294967295
          %v838 = vsel %vm835, %v829, 4294967295
          %v839 = vsel %vm836, %v830, 4294967295
          %v840 = vmul.f32 %v567, 3.0
          %v841 = vmin.f32 %v840, 300.0
          loop: start=0, step=1, limit=31
          $region69: #{tpu_custom_call.1} parent=67 // loop_pre_header
            _
          $region70: #{tpu_custom_call.1} parent=67 // loop_header
            %s843 = sphi 0, %s847
            %p844 = scmp.ge.s32.totalorder %s843, 31
            %v848 = vphi 0, %v866
            %s849 = sphi 1073741824, %s867
          $region71: #{tpu_custom_call.1} parent=67 // loop_header_branch
            %846 = sbr.rel (%p844) target = $region75
          $region72: #{tpu_custom_call.1} parent=67 // loop_body
            %v850 = vstv %s849
            %v851 = vor.u32 %v848, %v850
            %vm852 = vcmp.ge.s32.totalorder %v837, %v851
            %vm853 = vcmp.ge.s32.totalorder %v838, %v851
            %vm854 = vcmp.ge.s32.totalorder %v839, %v851
            %v855 = vsel %vm852, 1, 0
            %v856 = vsel %vm853, 1, 0
            %v857 = vsel %vm854, 1, 0
            %v858 = vcvt.s32.f32 %v855
            %v859 = vcvt.s32.f32 %v856
            %v860 = vcvt.s32.f32 %v857
            %v861 = vadd.f32 %v858, %v859
            %v862 = vadd.f32 %v861, %v860
            %863 = vadd.xlane.f32.xlu0 %v862
            %v864 = vpop.xlane.xlu0 %863
            %vm865 = vcmp.ge.f32.partialorder %v864, %v841
            %v866 = vsel %vm865, %v851, %v848
            %s867 = sshra.s32 %s849, 1
          $region73: #{tpu_custom_call.1} parent=67 // loop_footer
            %s847 = sadd.s32 1, %s843
          $region74: #{tpu_custom_call.1} parent=67 // loop_footer_branch
            %842 = sbr.rel target = $region70
          $region75: #{tpu_custom_call.1} parent=67 // loop_exit
            _
          %vm868 = vcmp.gt.s32.totalorder %v837, %v848
          %vm869 = vcmp.gt.s32.totalorder %v838, %v848
          %vm870 = vcmp.gt.s32.totalorder %v839, %v848
          %vm871 = vcmp.eq.s32.totalorder %v837, %v848
          %vm872 = vcmp.eq.s32.totalorder %v838, %v848
          %vm873 = vcmp.eq.s32.totalorder %v839, %v848
          %v874 = vsel %vm868, 1, 0
          %v875 = vsel %vm869, 1, 0
          %v876 = vsel %vm870, 1, 0
          %v877 = vcvt.s32.f32 %v874
          %v878 = vcvt.s32.f32 %v875
          %v879 = vcvt.s32.f32 %v876
          %v880 = vadd.f32 %v877, %v878
          %v881 = vadd.f32 %v880, %v879
          %882 = vadd.xlane.f32.xlu0 %v881
          %v883 = vpop.xlane.xlu0 %882
          %v884 = vsub.f32 %v841, %v883
          loop: start=0, step=1, limit=9
          $region76: #{tpu_custom_call.1} parent=67 // loop_pre_header
            _
          $region77: #{tpu_custom_call.1} parent=67 // loop_header
            %s886 = sphi 0, %s890
            %p887 = scmp.ge.s32.totalorder %s886, 9
            %v891 = vphi 0, %v912
            %s892 = sphi 256, %s913
          $region78: #{tpu_custom_call.1} parent=67 // loop_header_branch
            %889 = sbr.rel (%p887) target = $region82
          $region79: #{tpu_custom_call.1} parent=67 // loop_body
            %v893 = vstv %s892
            %v894 = vor.u32 %v891, %v893
            %vm895 = vcmp.le.s32.totalorder %v825, %v894
            %vm896 = vcmp.le.s32.totalorder %v826, %v894
            %vm897 = vcmp.le.s32.totalorder %v827, %v894
            %vm898 = vmand %vm871, %vm895
            %vm899 = vmand %vm872, %vm896
            %vm900 = vmand %vm873, %vm897
            %v901 = vsel %vm898, 1, 0
            %v902 = vsel %vm899, 1, 0
            %v903 = vsel %vm900, 1, 0
            %v904 = vcvt.s32.f32 %v901
            %v905 = vcvt.s32.f32 %v902
            %v906 = vcvt.s32.f32 %v903
            %v907 = vadd.f32 %v904, %v905
            %v908 = vadd.f32 %v907, %v906
            %909 = vadd.xlane.f32.xlu0 %v908
            %v910 = vpop.xlane.xlu0 %909
            %vm911 = vcmp.le.f32.partialorder %v910, %v884
            %v912 = vsel %vm911, %v894, %v891
            %s913 = sshra.s32 %s892, 1
          $region80: #{tpu_custom_call.1} parent=67 // loop_footer
            %s890 = sadd.s32 1, %s886
          $region81: #{tpu_custom_call.1} parent=67 // loop_footer_branch
            %885 = sbr.rel target = $region77
          $region82: #{tpu_custom_call.1} parent=67 // loop_exit
            _
          %vm914 = vcmp.le.s32.totalorder %v825, %v891
          %vm915 = vcmp.le.s32.totalorder %v826, %v891
          %vm916 = vcmp.le.s32.totalorder %v827, %v891
          %vm917 = vmand %vm871, %vm914
          %vm918 = vmand %vm872, %vm915
          %vm919 = vmand %vm873, %vm916
          %vm920 = vcmp.gt.f32.partialorder %v884, 0.0
          %v921 = vsel %vm920, 1, 0
          %vm922 = vcmp.eq.s32.totalorder %v921, 1
          %vm923 = vmand %vm917, %vm922
          %vm924 = vmand %vm918, %vm922
          %vm925 = vmand %vm919, %vm922
          %vm926 = vmor %vm868, %vm923
          %vm927 = vmor %vm869, %vm924
          %vm928 = vmor %vm870, %vm925
          %v929 = vsel %vm926, 1, 0
          %v930 = vsel %vm927, 1, 0
          %v931 = vsel %vm928, 1, 0
          %v932 = vcvt.s32.f32 %v929
          %v933 = vcvt.s32.f32 %v930
          %v934 = vcvt.s32.f32 %v931
          %v935 = vadd.f32 %v561, %v932
          %v936 = vadd.f32 %v562, %v933
          %v937 = vadd.f32 %v563, %v934
          %v938 = vmul.f32 %v818, %v935
          %v939 = vmul.f32 %v819, %v936
          %v940 = vmul.f32 %v820, %v937
          %v941 = vadd.f32 %v938, %v939
          %v942 = vadd.f32 %v941, %v940
          %943 = vadd.xlane.f32.xlu0 %v942
          %v944 = vpop.xlane.xlu0 %943
          %v945 = vadd.f32 %v799, %v944
          %vm946 = vcmp.gt.f32.partialorder %v567, 0.0
          %v947 = vsel %vm946, 1, 0
          %v948 = vcvt.s32.f32 %v947
          %v949 = vmax.f32 %v567, 1e-06
          %v950 = vmul.f32 %v945, %v948
          %v951 = vrcp.pop %v949
          %v952 = vmul.f32 %v950, %v951
          %vm953 = vcmask 7168
          %954 = vst.msk [vmem:[%s389] sm:$0xff] %vm953, %v952
        $region68: #{tpu_custom_call.1} parent=39 // pred_fallthru
          _
        %p955 = scmp.lt.s32.totalorder %s29, 1
        %s956 = scalar_select %p955, %s29, 1
        %s957 = smul.addr %s956, 8
        %s958 = scalar_lea.vmem %s5, %s957
        // Predicated region
        $region83: #{tpu_custom_call.1} parent=39 // pred_check
          %p959 = pneg %p182
        $region84: #{tpu_custom_call.1} parent=39 // pred_check_branch
          %961 = sbr.rel (%p959) target = $region86
        $region85: #{tpu_custom_call.1} parent=39 // pred_region
          _
        $region86: #{tpu_custom_call.1} parent=39 // pred_fallthru
          _
      $region40: #{tpu_custom_call.1} parent=5 // pred_fallthru
        _
      %p962 = scmp.le.s32.totalorder 2, %s20
      // Predicated region
      $region87: #{tpu_custom_call.1} parent=5 // pred_check
        %p963 = pneg %p962
      $region88: #{tpu_custom_call.1} parent=5 // pred_check_branch
        %965 = sbr.rel (%p963) target = $region90
      $region89: #{tpu_custom_call.1} parent=5 // pred_region
        %s966 = ssub.s32 %s20, 2
        // Predicated region
        $region91: #{tpu_custom_call.1} parent=89 // pred_check
          %p967 = pneg %p188
        $region92: #{tpu_custom_call.1} parent=89 // pred_check_branch
          %969 = sbr.rel (%p967) target = $region94
        $region93: #{tpu_custom_call.1} parent=89 // pred_region
          %p970 = scmp.lt.s32.totalorder %s31, 1
          %s971 = scalar_select %p970, %s31, 1
          %s972 = smul.addr %s971, 8
          %s973 = scalar_lea.vmem %s5, %s972
        $region94: #{tpu_custom_call.1} parent=89 // pred_fallthru
          _
      $region90: #{tpu_custom_call.1} parent=5 // pred_fallthru
        _
    $region6: #{tpu_custom_call.1} parent=1 // loop_footer
      %s24 = sadd.s32 1, %s20
    $region7: #{tpu_custom_call.1} parent=1 // loop_footer_branch
      %19 = sbr.rel target = $region3
    $region8: #{tpu_custom_call.1} parent=1 // loop_exit
      _
    %974 = vsyncpa [#allocation6], 1
    %s975 = scalar_lea.sflag [#allocation6], 1
    %976 = vsyncpa %s975, 1
    %977 = vsyncpa [#allocation8], 1
    %s978 = scalar_lea.sflag [#allocation8], 1
    %979 = vsyncpa %s978, 1
    %980 = vsyncpa [#allocation11], 1
    %s981 = scalar_lea.sflag [#allocation11], 1
    %982 = vsyncpa %s981, 1

</llo_original>
